<compile_context>
chip_gen: v6e
topology: v6e:2x2x1
jax: 0.10.0
libtpu: 0.0.40
codegen_flags: <defaults>
</compile_context>

<pallas_src>
import math

import jax
import jax.numpy as jnp
from jax.experimental import pallas as pl
from jax.experimental.pallas import tpu as pltpu

SIGMA = 1.0  # Spherical(1.0, trainable=False) -> fixed scalar covariance scale


def _round_up(x, m):
    return ((x + m - 1) // m) * m


def _sublane_packing(dtype):
    itemsize = jnp.dtype(dtype).itemsize
    return {4: 8, 2: 16, 1: 32}.get(itemsize, 8)


def _default_block_bytes():
    """HBM-friendly block size whose in+out double-buffering fits the
    scoped-VMEM defaults (v5e: 16 MiB, v6e/v7x: 32 MiB)."""
    try:
        kind = jax.devices()[0].device_kind.lower()
    except Exception:
        kind = ""
    if "v7" in kind or "v6" in kind:
        return 4 << 20   # 4 MiB block -> ~16 MiB double-buffered
    if "v5" in kind:
        return 2 << 20   # 2 MiB block -> ~8 MiB double-buffered
    return 1 << 20       # conservative for unknown / older chips


def _make_kernel(sigma):
    # NOTE: sigma is concretized here (Python float).  A traced / trainable sigma
    # would need to be passed as a kernel operand instead.
    def kernel(x_ref, a_ref, o_ref):
        # forward(x) = -sigma * (x - a) == sigma * (a - x); negation folded.
        diff = a_ref[...] - x_ref[...]
        if sigma != 1.0:
            diff = diff * jnp.asarray(sigma, diff.dtype)
        o_ref[...] = diff.astype(o_ref.dtype)

    return kernel


def _compiler_params():
    return pltpu.CompilerParams(dimension_semantics=("parallel",))


def _linear_field_lane_dense(x, attractor, sigma, L, block_bytes):
    """Primary path: flatten x to a lane-dense (rows, L) layout, L % 128 == 0."""
    N, D = x.shape
    dtype = x.dtype
    itemsize = jnp.dtype(dtype).itemsize
    total = N * D

    # Attractor tiled across one lane-dense row; stays VMEM-resident.
    a_row = jnp.tile(attractor.astype(dtype).reshape(-1), L // D).reshape(1, L)

    pack = _sublane_packing(dtype)
    rows = pl.cdiv(total, L)
    tr_cap = max(pack, (block_bytes // (L * itemsize)) // pack * pack)
    tr = min(tr_cap, _round_up(rows, pack))
    rows_padded = _round_up(rows, tr)
    padded_total = rows_padded * L

    x_flat = x.reshape(-1)
    needs_pad = padded_total > total
    if needs_pad:
        x_flat = jnp.pad(x_flat, (0, padded_total - total))
    x2 = x_flat.reshape(rows_padded, L)

    out2 = pl.pallas_call(
        _make_kernel(float(sigma)),
        out_shape=jax.ShapeDtypeStruct((rows_padded, L), dtype),
        grid_spec=pl.GridSpec(
            grid=(rows_padded // tr,),
            in_specs=[
                pl.BlockSpec((tr, L), lambda i: (i, 0)),   # row tiles of x
                pl.BlockSpec((1, L), lambda i: (0, 0)),    # resident attractor row
            ],
            out_specs=pl.BlockSpec((tr, L), lambda i: (i, 0)),
        ),
        compiler_params=_compiler_params(),
        cost_estimate=pl.CostEstimate(
            flops=padded_total,
            transcendentals=0,
            bytes_accessed=2 * padded_total * itemsize + L * itemsize,
        ),
        # Only alias when x2 is a kernel-private padded temp (never the caller's x).
        input_output_aliases=({0: 0} if needs_pad else {}),
    )(x2, a_row)

    if needs_pad:
        return out2.reshape(-1)[:total].reshape(N, D)
    # No-pad fast path: no trailing trim copy.
    return out2.reshape(N, D)


def _linear_field_rowtiled(x, attractor, sigma, block_bytes):
    """Fallback for awkward D (lcm(D,128) too large): tile (N, D) directly."""
    N, D = x.shape
    dtype = x.dtype
    itemsize = jnp.dtype(dtype).itemsize
    pack = _sublane_packing(dtype)

    a_row = attractor.astype(dtype).reshape(1, D)

    tr = max(pack, (block_bytes // max(1, D * itemsize)) // pack * pack)
    tr = min(tr, _round_up(N, pack))

    return pl.pallas_call(
        _make_kernel(float(sigma)),
        out_shape=jax.ShapeDtypeStruct((N, D), dtype),
        grid_spec=pl.GridSpec(
            grid=(pl.cdiv(N, tr),),
            in_specs=[
                pl.BlockSpec((tr, D), lambda i: (i, 0)),
                pl.BlockSpec((1, D), lambda i: (0, 0)),
            ],
            out_specs=pl.BlockSpec((tr, D), lambda i: (i, 0)),
        ),
        compiler_params=_compiler_params(),
        cost_estimate=pl.CostEstimate(
            flops=N * D,
            transcendentals=0,
            bytes_accessed=2 * N * D * itemsize + D * itemsize,
        ),
    )(x, a_row)


def linear_field(x, attractor, sigma=SIGMA, *, max_lanes=1024, lane_target=512,
                 block_bytes=None, min_pallas_elements=1 << 20):
    """forward(x) = -sigma * (x - attractor).

    x: (N, D), attractor: (D,) -> (N, D), same dtype as x.
    sigma must be a Python scalar (fixed Spherical covariance).
    """
    N, D = x.shape
    total = N * D
    dtype = x.dtype

    # Small-input fallback: launch + layout plumbing dominates below ~1M elements.
    if total < min_pallas_elements:
        a = attractor.astype(dtype)
        return (jnp.asarray(sigma, dtype) * (a[None, :] - x)).astype(dtype)

    if block_bytes is None:
        block_bytes = _default_block_bytes()

    base = (D * 128) // math.gcd(D, 128)  # lcm(D, 128); lane width must be a multiple
    if base <= max_lanes:
        L = base * max(1, min(lane_target, max_lanes) // base)
        return _linear_field_lane_dense(x, attractor, sigma, L, block_bytes)
    return _linear_field_rowtiled(x, attractor, sigma, block_bytes)


if __name__ == "__main__":
    key = jax.random.PRNGKey(0)
    kx, ka = jax.random.split(key)

    D = 4
    attractor = jax.random.normal(ka, (D,), dtype=jnp.float32)

    def reference(xv):
        return -(SIGMA * (xv - attractor[None, :]))

    # 1) Small batch forced through the Pallas kernel (padded + aliased path).
    x_small = jax.random.normal(kx, (8, D), dtype=jnp.float32)
    out_small = jax.block_until_ready(
        linear_field(x_small, attractor, min_pallas_elements=0))
    assert out_small.shape == x_small.shape and out_small.dtype == x_small.dtype
    assert jnp.allclose(out_small, reference(x_small), atol=1e-6, rtol=1e-6)

    # 2) Tile-aligned batch (no-pad fast path: no jnp.pad, no output trim copy).
    x_big = jax.random.normal(kx, (1024, D), dtype=jnp.float32)
    out_big = jax.block_until_ready(
        linear_field(x_big, attractor, min_pallas_elements=0))
    assert out_big.shape == x_big.shape and out_big.dtype == x_big.dtype
    assert jnp.allclose(out_big, reference(x_big), atol=1e-6, rtol=1e-6)

    # 3) Default small-input fallback path (plain XLA).
    out_fb = jax.block_until_ready(linear_field(x_small, attractor))
    assert jnp.allclose(out_fb, reference(x_small), atol=1e-6, rtol=1e-6)

    print("KERNEL_OK")
</pallas_src>

<mosaic_0001>
module attributes {stable_mosaic.version = 11 : i64} {
  func.func @kernel(%arg0: i32, %arg1: memref<8x512xf32, #tpu.memory_space<vmem>>, %arg2: memref<1x512xf32, #tpu.memory_space<vmem>>, %arg3: memref<8x512xf32, #tpu.memory_space<vmem>>) attributes {dimension_semantics = [#tpu.dimension_semantics<parallel>], iteration_bounds = array<i64: 1>, scalar_prefetch = 0 : i64, scratch_operands = 0 : i64, tpu.core_type = #tpu.core_type<tc>, window_params = [{transform_indices = @transform_0, window_bounds = array<i64: 8, 512>}, {pipeline_mode = #tpu.pipeline_mode<synchronous>, transform_indices = @transform_1, window_bounds = array<i64: 1, 512>}, {transform_indices = @transform_2, window_bounds = array<i64: 8, 512>}]} {
    %c0 = arith.constant 0 : index
    %c0_0 = arith.constant 0 : index
    %0 = vector.load %arg2[%c0, %c0_0] : memref<1x512xf32, #tpu.memory_space<vmem>>, vector<1x512xf32>
    %c0_1 = arith.constant 0 : index
    %c0_2 = arith.constant 0 : index
    %1 = vector.load %arg1[%c0_1, %c0_2] : memref<8x512xf32, #tpu.memory_space<vmem>>, vector<8x512xf32>
    %2 = vector.broadcast %0 : vector<1x512xf32> to vector<8x512xf32>
    %3 = arith.subf %2, %1 : vector<8x512xf32>
    %c0_3 = arith.constant 0 : index
    %c0_4 = arith.constant 0 : index
    %4 = vector.load %arg3[%c0_3, %c0_4] : memref<8x512xf32, #tpu.memory_space<vmem>>, vector<8x512xf32>
    tpu.vector_store %arg3[%c0_3, %c0_4], %3 {strides = array<i32>} : memref<8x512xf32, #tpu.memory_space<vmem>>, vector<8x512xf32>,
    return
  }
  func.func @transform_0(%arg0: i32) -> (i32, i32) {
    %c0_i32 = arith.constant 0 : i32
    %c0_i32_0 = arith.constant 0 : i32
    return %arg0, %c0_i32 : i32, i32
  }
  func.func @transform_1(%arg0: i32) -> (i32, i32) {
    %c0_i32 = arith.constant 0 : i32
    %c0_i32_0 = arith.constant 0 : i32
    %c0_i32_1 = arith.constant 0 : i32
    return %c0_i32, %c0_i32_0 : i32, i32
  }
  func.func @transform_2(%arg0: i32) -> (i32, i32) {
    %c0_i32 = arith.constant 0 : i32
    %c0_i32_0 = arith.constant 0 : i32
    return %arg0, %c0_i32 : i32, i32
  }
}

</mosaic_0001>

<llo_original>
// kernel: tpu_custom_call.1
$region0: #{tpu_custom_call.1}
  #allocation0 [shape = 'u32[]', space=smem, size = 0x4, offset = 0x4, fixed_abs, tag = 'smem constant byte address 0x4 - core index']
  #allocation1 [shape = 'u32[144,128]{1,0:T(1,128)}', space=vmem, size = 0x12000, scoped, tag = 'internal scratch']
  %s0 = inlined_call_operand.hbm [shape: f32[8,512], index: 0, kind: input, shape index: {}, may-alias: {0,2}]
  %s1 = inlined_call_operand.vmem [shape: f32[1,512], index: 1, kind: input, shape index: {}]
  %s2 = inlined_call_operand.hbm [shape: f32[8,512], index: 2, kind: output, shape index: {}, may-alias: {0,2}]
  %s3 = sld [smem:[#allocation0]]
  $region22: #{tpu_custom_call.1} parent=0
    _
  %s5 = ssub.s32 1, %s3
  %s6 = scalar_select 0, %s5, %s3
  $region1: #{tpu_custom_call.1} parent=0
    #allocation2 [shape = 'u8[16384]{0}', space=vmem, size = 0x4000, scoped, tag = 'input window, operand 0, single buffered']
    #allocation3 [shape = 's32[1]{0}', space=sflag, size = 0x4, scoped, tag = 'scoped memory for tpu_custom_call.1']
    #allocation4 [shape = 's32[1]{0}', space=sflag, size = 0x4, scoped, tag = 'scoped memory for tpu_custom_call.1']
    #allocation5 [shape = 'u8[16384]{0}', space=vmem, size = 0x4000, scoped, tag = 'output window, operand 0, single buffered']
    %7 = vsyncpa [#allocation3], 0
    %8 = vsyncpa [#allocation4], 0
    // Predicated region
    $region2: #{tpu_custom_call.1} parent=1 // pred_check
      _
    $region3: #{tpu_custom_call.1} parent=1 // pred_check_branch
      %10 = sbr.rel (0) target = $region5
    $region4: #{tpu_custom_call.1} parent=1 // pred_region
      %s12 = ssub.s32 512, 512
      %13 = vsyncadd [#allocation3], %s12
      %s15 = sshll.u32 [#allocation2], 4
      %s16 = int_to_ptr.vmem [resolvable:$true] %s15
      %18 = dma.hbm_to_vmem [thread:$0]  %s0, 512, %s16, [#allocation3]
    $region5: #{tpu_custom_call.1} parent=1 // pred_fallthru
      _
    // Predicated region
    $region6: #{tpu_custom_call.1} parent=1 // pred_check
      _
    $region7: #{tpu_custom_call.1} parent=1 // pred_check_branch
      %20 = sbr.rel (0) target = $region9
    $region8: #{tpu_custom_call.1} parent=1 // pred_region
      _
    $region9: #{tpu_custom_call.1} parent=1 // pred_fallthru
      _
    // Predicated region
    $region10: #{tpu_custom_call.1} parent=1 // pred_check
      _
    $region11: #{tpu_custom_call.1} parent=1 // pred_check_branch
      %22 = sbr.rel (0) target = $region13
    $region12: #{tpu_custom_call.1} parent=1 // pred_region
      %23 = dma.done [#allocation3], 512
    $region13: #{tpu_custom_call.1} parent=1 // pred_fallthru
      _
    %v24 = vld [vmem:[%s1] sm:$0xf]
    %v25 = vld [vmem:[#allocation2] sm:$0xff]
    %v26 = vld [vmem:[#allocation2 + $0x8] sm:$0xff]
    %v27 = vld [vmem:[#allocation2 + $0x10] sm:$0xff]
    %v28 = vld [vmem:[#allocation2 + $0x18] sm:$0xff]
    %v30 = vlaneseq
    %v31 = vshrl.u32 %v30, 7
    %v32 = vsub.s32 0, %v31
    %v33 = vrot.slane %v24, %v32
    %v34 = vlaneseq
    %v35 = vshrl.u32 %v34, 7
    %v36 = vsub.s32 1, %v35
    %v37 = vrot.slane %v24, %v36
    %v38 = vlaneseq
    %v39 = vshrl.u32 %v38, 7
    %v40 = vsub.s32 2, %v39
    %v41 = vrot.slane %v24, %v40
    %v42 = vlaneseq
    %v43 = vshrl.u32 %v42, 7
    %v44 = vsub.s32 3, %v43
    %v45 = vrot.slane %v24, %v44
    %v50 = vsub.f32 %v33, %v25
    %v51 = vsub.f32 %v37, %v26
    %v52 = vsub.f32 %v41, %v27
    %v53 = vsub.f32 %v45, %v28
    %54 = vst [vmem:[#allocation5] sm:$0xff] %v50
    %55 = vst [vmem:[#allocation5 + $0x8] sm:$0xff] %v51
    %56 = vst [vmem:[#allocation5 + $0x10] sm:$0xff] %v52
    %57 = vst [vmem:[#allocation5 + $0x18] sm:$0xff] %v53
    // Predicated region
    $region14: #{tpu_custom_call.1} parent=1 // pred_check
      _
    $region15: #{tpu_custom_call.1} parent=1 // pred_check_branch
      %59 = sbr.rel (0) target = $region17
    $region16: #{tpu_custom_call.1} parent=1 // pred_region
      %s61 = ssub.s32 512, 512
      %62 = vsyncadd [#allocation4], %s61
      %s64 = sshll.u32 [#allocation5], 4
      %s65 = int_to_ptr.vmem [resolvable:$true] %s64
      %67 = dma.vmem_to_hbm [thread:$0]  %s65, 512, %s2, [#allocation4]
    $region17: #{tpu_custom_call.1} parent=1 // pred_fallthru
      _
    // Predicated region
    $region18: #{tpu_custom_call.1} parent=1 // pred_check
      _
    $region19: #{tpu_custom_call.1} parent=1 // pred_check_branch
      %69 = sbr.rel (0) target = $region21
    $region20: #{tpu_custom_call.1} parent=1 // pred_region
      %70 = dma.done [#allocation4], 512
    $region21: #{tpu_custom_call.1} parent=1 // pred_fallthru
      _
    %71 = vsyncpa [#allocation3], 1
    %72 = vsyncpa [#allocation4], 1

</llo_original>
